<compile_context>
chip_gen: v6e
topology: v6e:2x2x1
jax: 0.10.0
libtpu: 0.0.40
codegen_flags: <defaults>
</compile_context>

<pallas_src>
import functools

import jax
import jax.numpy as jnp
from jax import lax
from jax.experimental import pallas as pl
from jax.experimental.pallas import tpu as pltpu

LEAKY_SLOPE = 0.2
BN_EPS = 1e-5


def _dsconv_kernel(ph_ref, w_dw_ref, shift1_ref, w_pw_ref, shift2_ref, out_ref):
    # ph_ref    : (NB, 4, OH+1, OW+1, Cin) bf16  phase-decomposed padded input
    # w_dw_ref  : (9, Cin)  f32   depthwise weights (BN1 scale folded in)
    # shift1_ref: (1, Cin)  f32   BN1 shift
    # w_pw_ref  : (Cin, Cout) f32 pointwise weights (BN2 scale folded in)
    # shift2_ref: (1, Cout) f32   BN2 shift
    # out_ref   : (NB*OH*OW, Cout) f32
    nb, _, hh, hw, cin = ph_ref.shape
    oh, ow = hh - 1, hw - 1

    # Depthwise 3x3 stride-2 conv: each tap is a contiguous slice of the
    # phase tensor; load per-tap (only one slab live at a time), MAC in f32.
    acc = jnp.zeros((nb, oh, ow, cin), jnp.float32)
    for kh in range(3):                                    # static unroll
        for kw in range(3):
            p = 2 * (kh & 1) + (kw & 1)
            dh, dw = kh // 2, kw // 2
            tap = ph_ref[:, p, dh:dh + oh, dw:dw + ow, :].astype(jnp.float32)
            acc = acc + tap * w_dw_ref[3 * kh + kw, :]

    # BN1 shift (scale already folded into w_dw) + LeakyReLU(0.2)
    y = acc + shift1_ref[0]
    y = jnp.where(y > 0, y, LEAKY_SLOPE * y)

    # Pointwise 1x1 conv == channel matmul on the MXU, M = NB*OH*OW rows.
    y2d = y.reshape(nb * oh * ow, cin)
    z = jnp.dot(y2d, w_pw_ref[...], preferred_element_type=jnp.float32)

    # BN2 shift + LeakyReLU(0.2); write pre-flattened (M, Cout) slab.
    z = z + shift2_ref[0]
    z = jnp.where(z > 0, z, LEAKY_SLOPE * z)
    out_ref[...] = z.astype(out_ref.dtype)


def _fold_bn(gamma, beta, mean, var):
    scale = gamma / jnp.sqrt(var + BN_EPS)
    shift = beta - mean * scale
    return scale.reshape(1, -1), shift.reshape(1, -1)


@functools.partial(jax.jit, static_argnames=("stride",))
def dsconv_forward(x_nchw, params, stride=2):
    """Forward pass of _DSConv. x_nchw: (N, Cin, H, W) float32, NCHW."""
    if stride != 2:
        raise NotImplementedError("only stride=2 (module default) implemented")

    w_dw = params["w_dw"]   # (Cin, 1, 3, 3)
    w_pw = params["w_pw"]   # (Cout, Cin, 1, 1)
    cin, cout = w_dw.shape[0], w_pw.shape[0]

    scale1, shift1 = _fold_bn(params["bn1_gamma"], params["bn1_beta"],
                              params["bn1_mean"], params["bn1_var"])
    scale2, shift2 = _fold_bn(params["bn2_gamma"], params["bn2_beta"],
                              params["bn2_mean"], params["bn2_var"])

    n, _, h, w = x_nchw.shape
    oh = (h + 2 - 3) // 2 + 1
    ow = (w + 2 - 3) // 2 + 1
    hh, hw = oh + 1, ow + 1

    # NCHW -> NHWC -> pad to (2*hh, 2*hw) -> stride-2 space-to-depth phases.
    # XLA fuses this chain into a single relayout copy (~1x input traffic),
    # replacing the old 9x tap pre-gather round-trip.
    x = jnp.transpose(x_nchw, (0, 2, 3, 1)).astype(jnp.float32)
    x = jnp.pad(x, ((0, 0), (1, 2 * hh - h - 1), (1, 2 * hw - w - 1), (0, 0)))
    x = x.reshape(n, hh, 2, hw, 2, cin)
    x = jnp.transpose(x, (0, 2, 4, 1, 3, 5)).reshape(n, 4, hh, hw, cin)
    phases = x.astype(jnp.bfloat16)          # bf16 on the wire, f32 in-kernel

    # Fold BN scales into the conv weights (kernel only adds shifts).
    w_dw_k = (w_dw.reshape(cin, 9).T * scale1).astype(jnp.float32)   # (9, Cin)
    w_pw_k = (w_pw[:, :, 0, 0].T * scale2).astype(jnp.float32)       # (Cin, Cout)
    shift1 = shift1.astype(jnp.float32)
    shift2 = shift2.astype(jnp.float32)

    # Fold batch into the matmul M: target >= 256 rows per grid step.
    rows_per_image = oh * ow
    bb = max(1, min(n, 256 // max(1, rows_per_image)))
    while n % bb:
        bb -= 1
    grid = (n // bb,)
    m_total = n * rows_per_image

    cost = pl.CostEstimate(
        flops=2 * m_total * cin * (9 + cout),
        transcendentals=0,
        bytes_accessed=(phases.size * phases.dtype.itemsize
                        + m_total * cout * 4
                        + (w_dw_k.size + w_pw_k.size
                           + shift1.size + shift2.size) * 4))

    out2d = pl.pallas_call(
        _dsconv_kernel,
        out_shape=jax.ShapeDtypeStruct((m_total, cout), jnp.float32),
        grid=grid,
        in_specs=[
            pl.BlockSpec((bb, 4, hh, hw, cin), lambda b: (b, 0, 0, 0, 0)),
            pl.BlockSpec((9, cin), lambda b: (0, 0)),
            pl.BlockSpec((1, cin), lambda b: (0, 0)),
            pl.BlockSpec((cin, cout), lambda b: (0, 0)),
            pl.BlockSpec((1, cout), lambda b: (0, 0)),
        ],
        out_specs=pl.BlockSpec((bb * rows_per_image, cout), lambda b: (b, 0)),
        compiler_params=pltpu.CompilerParams(
            dimension_semantics=("parallel",),
            vmem_limit_bytes=32 * 1024 * 1024),
        cost_estimate=cost,
    )(phases, w_dw_k, shift1, w_pw_k, shift2)

    # (N*OH*OW, Cout) -> NHWC -> NCHW (PyTorch output convention).
    out_nhwc = out2d.reshape(n, oh, ow, cout)
    return jnp.transpose(out_nhwc, (0, 3, 1, 2))


def _reference(x_nchw, params, stride=2):
    """Pure-JAX/XLA reference (matches the kernel's bf16 wire precision)."""
    x = x_nchw.astype(jnp.bfloat16).astype(jnp.float32)
    w_dw = params["w_dw"]
    w_pw = params["w_pw"]
    cin = w_dw.shape[0]
    y = lax.conv_general_dilated(
        x, w_dw, window_strides=(stride, stride),
        padding=((1, 1), (1, 1)), feature_group_count=cin,
        dimension_numbers=("NCHW", "OIHW", "NCHW"),
        precision=lax.Precision.HIGHEST)
    s1, b1 = _fold_bn(params["bn1_gamma"], params["bn1_beta"],
                      params["bn1_mean"], params["bn1_var"])
    y = y * s1.reshape(1, -1, 1, 1) + b1.reshape(1, -1, 1, 1)
    y = jnp.where(y > 0, y, LEAKY_SLOPE * y)
    z = jnp.einsum("nchw,oc->nohw", y, w_pw[:, :, 0, 0],
                   precision=lax.Precision.HIGHEST)
    s2, b2 = _fold_bn(params["bn2_gamma"], params["bn2_beta"],
                      params["bn2_mean"], params["bn2_var"])
    z = z * s2.reshape(1, -1, 1, 1) + b2.reshape(1, -1, 1, 1)
    return jnp.where(z > 0, z, LEAKY_SLOPE * z)


def _init_params(key, cin, cout):
    k1, k2 = jax.random.split(key)
    return {
        "w_dw": 0.3 * jax.random.normal(k1, (cin, 1, 3, 3), jnp.float32),
        "w_pw": 0.3 * jax.random.normal(k2, (cout, cin, 1, 1), jnp.float32),
        "bn1_gamma": 1.0 + 0.10 * jnp.arange(cin, dtype=jnp.float32),
        "bn1_beta": 0.05 * jnp.arange(cin, dtype=jnp.float32),
        "bn1_mean": 0.01 * jnp.arange(cin, dtype=jnp.float32),
        "bn1_var": 1.0 + 0.02 * jnp.arange(cin, dtype=jnp.float32),
        "bn2_gamma": 1.0 - 0.03 * jnp.arange(cout, dtype=jnp.float32),
        "bn2_beta": -0.02 * jnp.arange(cout, dtype=jnp.float32),
        "bn2_mean": 0.005 * jnp.arange(cout, dtype=jnp.float32),
        "bn2_var": 1.0 + 0.01 * jnp.arange(cout, dtype=jnp.float32),
    }


if __name__ == "__main__":
    key = jax.random.PRNGKey(0)
    kx, kp = jax.random.split(key)

    N, CIN, COUT, H, W = 2, 8, 16, 16, 16
    x = jax.random.normal(kx, (N, CIN, H, W), jnp.float32)   # NCHW input
    params = _init_params(kp, CIN, COUT)

    out = jax.block_until_ready(dsconv_forward(x, params))
    ref = jax.block_until_ready(_reference(x, params))

    assert out.shape == (N, COUT, H // 2, W // 2), out.shape
    max_err = float(jnp.max(jnp.abs(out - ref)))
    assert jnp.allclose(out, ref, atol=1e-3, rtol=1e-3), max_err

    print("KERNEL_OK")
</pallas_src>

<mosaic_0001>
module attributes {stable_mosaic.version = 11 : i64} {
  func.func @_dsconv_kernel(%arg0: i32, %arg1: memref<2x4x9x9x8xbf16, #tpu.memory_space<vmem>>, %arg2: memref<9x8xf32, #tpu.memory_space<vmem>>, %arg3: memref<1x8xf32, #tpu.memory_space<vmem>>, %arg4: memref<8x16xf32, #tpu.memory_space<vmem>>, %arg5: memref<1x16xf32, #tpu.memory_space<vmem>>, %arg6: memref<128x16xf32, #tpu.memory_space<vmem>>) attributes {dimension_semantics = [#tpu.dimension_semantics<parallel>], iteration_bounds = array<i64: 1>, scalar_prefetch = 0 : i64, scratch_operands = 0 : i64, tpu.core_type = #tpu.core_type<tc>, window_params = [{transform_indices = @transform_0, window_bounds = array<i64: 2, 4, 9, 9, 8>}, {pipeline_mode = #tpu.pipeline_mode<synchronous>, transform_indices = @transform_1, window_bounds = array<i64: 9, 8>}, {pipeline_mode = #tpu.pipeline_mode<synchronous>, transform_indices = @transform_2, window_bounds = array<i64: 1, 8>}, {pipeline_mode = #tpu.pipeline_mode<synchronous>, transform_indices = @transform_3, window_bounds = array<i64: 8, 16>}, {pipeline_mode = #tpu.pipeline_mode<synchronous>, transform_indices = @transform_4, window_bounds = array<i64: 1, 16>}, {transform_indices = @transform_5, window_bounds = array<i64: 128, 16>}]} {
    %cst = arith.constant 0.000000e+00 : f32
    %0 = vector.broadcast %cst : f32 to vector<2x8x8x8xf32>
    %c0 = arith.constant 0 : index
    %c0_0 = arith.constant 0 : index
    %c0_1 = arith.constant 0 : index
    %c0_2 = arith.constant 0 : index
    %c0_3 = arith.constant 0 : index
    %1 = vector.load %arg1[%c0, %c0_0, %c0_1, %c0_2, %c0_3] : memref<2x4x9x9x8xbf16, #tpu.memory_space<vmem>>, vector<2x1x8x8x8xbf16>
    %2 = vector.shape_cast %1 : vector<2x1x8x8x8xbf16> to vector<2x8x8x8xbf16>
    %3 = arith.extf %2 : vector<2x8x8x8xbf16> to vector<2x8x8x8xf32>
    %c0_4 = arith.constant 0 : index
    %c0_5 = arith.constant 0 : index
    %4 = vector.load %arg2[%c0_4, %c0_5] : memref<9x8xf32, #tpu.memory_space<vmem>>, vector<1x8xf32>
    %5 = vector.shape_cast %4 : vector<1x8xf32> to vector<8xf32>
    %6 = vector.shape_cast %5 : vector<8xf32> to vector<1x1x1x8xf32>
    %7 = vector.broadcast %6 : vector<1x1x1x8xf32> to vector<2x8x8x8xf32>
    %8 = arith.mulf %3, %7 : vector<2x8x8x8xf32>
    %9 = arith.addf %0, %8 : vector<2x8x8x8xf32>
    %c0_6 = arith.constant 0 : index
    %c1 = arith.constant 1 : index
    %c0_7 = arith.constant 0 : index
    %c0_8 = arith.constant 0 : index
    %c0_9 = arith.constant 0 : index
    %10 = vector.load %arg1[%c0_6, %c1, %c0_7, %c0_8, %c0_9] : memref<2x4x9x9x8xbf16, #tpu.memory_space<vmem>>, vector<2x1x8x8x8xbf16>
    %11 = vector.shape_cast %10 : vector<2x1x8x8x8xbf16> to vector<2x8x8x8xbf16>
    %12 = arith.extf %11 : vector<2x8x8x8xbf16> to vector<2x8x8x8xf32>
    %c1_10 = arith.constant 1 : index
    %c0_11 = arith.constant 0 : index
    %13 = vector.load %arg2[%c1_10, %c0_11] : memref<9x8xf32, #tpu.memory_space<vmem>>, vector<1x8xf32>
    %14 = vector.shape_cast %13 : vector<1x8xf32> to vector<8xf32>
    %15 = vector.shape_cast %14 : vector<8xf32> to vector<1x1x1x8xf32>
    %16 = vector.broadcast %15 : vector<1x1x1x8xf32> to vector<2x8x8x8xf32>
    %17 = arith.mulf %12, %16 : vector<2x8x8x8xf32>
    %18 = arith.addf %9, %17 : vector<2x8x8x8xf32>
    %c0_12 = arith.constant 0 : index
    %c0_13 = arith.constant 0 : index
    %c0_14 = arith.constant 0 : index
    %c1_15 = arith.constant 1 : index
    %c0_16 = arith.constant 0 : index
    %19 = vector.load %arg1[%c0_12, %c0_13, %c0_14, %c1_15, %c0_16] : memref<2x4x9x9x8xbf16, #tpu.memory_space<vmem>>, vector<2x1x8x8x8xbf16>
    %20 = vector.shape_cast %19 : vector<2x1x8x8x8xbf16> to vector<2x8x8x8xbf16>
    %21 = arith.extf %20 : vector<2x8x8x8xbf16> to vector<2x8x8x8xf32>
    %c2 = arith.constant 2 : index
    %c0_17 = arith.constant 0 : index
    %22 = vector.load %arg2[%c2, %c0_17] : memref<9x8xf32, #tpu.memory_space<vmem>>, vector<1x8xf32>
    %23 = vector.shape_cast %22 : vector<1x8xf32> to vector<8xf32>
    %24 = vector.shape_cast %23 : vector<8xf32> to vector<1x1x1x8xf32>
    %25 = vector.broadcast %24 : vector<1x1x1x8xf32> to vector<2x8x8x8xf32>
    %26 = arith.mulf %21, %25 : vector<2x8x8x8xf32>
    %27 = arith.addf %18, %26 : vector<2x8x8x8xf32>
    %c0_18 = arith.constant 0 : index
    %c2_19 = arith.constant 2 : index
    %c0_20 = arith.constant 0 : index
    %c0_21 = arith.constant 0 : index
    %c0_22 = arith.constant 0 : index
    %28 = vector.load %arg1[%c0_18, %c2_19, %c0_20, %c0_21, %c0_22] : memref<2x4x9x9x8xbf16, #tpu.memory_space<vmem>>, vector<2x1x8x8x8xbf16>
    %29 = vector.shape_cast %28 : vector<2x1x8x8x8xbf16> to vector<2x8x8x8xbf16>
    %30 = arith.extf %29 : vector<2x8x8x8xbf16> to vector<2x8x8x8xf32>
    %c3 = arith.constant 3 : index
    %c0_23 = arith.constant 0 : index
    %31 = vector.load %arg2[%c3, %c0_23] : memref<9x8xf32, #tpu.memory_space<vmem>>, vector<1x8xf32>
    %32 = vector.shape_cast %31 : vector<1x8xf32> to vector<8xf32>
    %33 = vector.shape_cast %32 : vector<8xf32> to vector<1x1x1x8xf32>
    %34 = vector.broadcast %33 : vector<1x1x1x8xf32> to vector<2x8x8x8xf32>
    %35 = arith.mulf %30, %34 : vector<2x8x8x8xf32>
    %36 = arith.addf %27, %35 : vector<2x8x8x8xf32>
    %c0_24 = arith.constant 0 : index
    %c3_25 = arith.constant 3 : index
    %c0_26 = arith.constant 0 : index
    %c0_27 = arith.constant 0 : index
    %c0_28 = arith.constant 0 : index
    %37 = vector.load %arg1[%c0_24, %c3_25, %c0_26, %c0_27, %c0_28] : memref<2x4x9x9x8xbf16, #tpu.memory_space<vmem>>, vector<2x1x8x8x8xbf16>
    %38 = vector.shape_cast %37 : vector<2x1x8x8x8xbf16> to vector<2x8x8x8xbf16>
    %39 = arith.extf %38 : vector<2x8x8x8xbf16> to vector<2x8x8x8xf32>
    %c4 = arith.constant 4 : index
    %c0_29 = arith.constant 0 : index
    %40 = vector.load %arg2[%c4, %c0_29] : memref<9x8xf32, #tpu.memory_space<vmem>>, vector<1x8xf32>
    %41 = vector.shape_cast %40 : vector<1x8xf32> to vector<8xf32>
    %42 = vector.shape_cast %41 : vector<8xf32> to vector<1x1x1x8xf32>
    %43 = vector.broadcast %42 : vector<1x1x1x8xf32> to vector<2x8x8x8xf32>
    %44 = arith.mulf %39, %43 : vector<2x8x8x8xf32>
    %45 = arith.addf %36, %44 : vector<2x8x8x8xf32>
    %c0_30 = arith.constant 0 : index
    %c2_31 = arith.constant 2 : index
    %c0_32 = arith.constant 0 : index
    %c1_33 = arith.constant 1 : index
    %c0_34 = arith.constant 0 : index
    %46 = vector.load %arg1[%c0_30, %c2_31, %c0_32, %c1_33, %c0_34] : memref<2x4x9x9x8xbf16, #tpu.memory_space<vmem>>, vector<2x1x8x8x8xbf16>
    %47 = vector.shape_cast %46 : vector<2x1x8x8x8xbf16> to vector<2x8x8x8xbf16>
    %48 = arith.extf %47 : vector<2x8x8x8xbf16> to vector<2x8x8x8xf32>
    %c5 = arith.constant 5 : index
    %c0_35 = arith.constant 0 : index
    %49 = vector.load %arg2[%c5, %c0_35] : memref<9x8xf32, #tpu.memory_space<vmem>>, vector<1x8xf32>
    %50 = vector.shape_cast %49 : vector<1x8xf32> to vector<8xf32>
    %51 = vector.shape_cast %50 : vector<8xf32> to vector<1x1x1x8xf32>
    %52 = vector.broadcast %51 : vector<1x1x1x8xf32> to vector<2x8x8x8xf32>
    %53 = arith.mulf %48, %52 : vector<2x8x8x8xf32>
    %54 = arith.addf %45, %53 : vector<2x8x8x8xf32>
    %c0_36 = arith.constant 0 : index
    %c0_37 = arith.constant 0 : index
    %c1_38 = arith.constant 1 : index
    %c0_39 = arith.constant 0 : index
    %c0_40 = arith.constant 0 : index
    %55 = vector.load %arg1[%c0_36, %c0_37, %c1_38, %c0_39, %c0_40] : memref<2x4x9x9x8xbf16, #tpu.memory_space<vmem>>, vector<2x1x8x8x8xbf16>
    %56 = vector.shape_cast %55 : vector<2x1x8x8x8xbf16> to vector<2x8x8x8xbf16>
    %57 = arith.extf %56 : vector<2x8x8x8xbf16> to vector<2x8x8x8xf32>
    %c6 = arith.constant 6 : index
    %c0_41 = arith.constant 0 : index
    %58 = vector.load %arg2[%c6, %c0_41] : memref<9x8xf32, #tpu.memory_space<vmem>>, vector<1x8xf32>
    %59 = vector.shape_cast %58 : vector<1x8xf32> to vector<8xf32>
    %60 = vector.shape_cast %59 : vector<8xf32> to vector<1x1x1x8xf32>
    %61 = vector.broadcast %60 : vector<1x1x1x8xf32> to vector<2x8x8x8xf32>
    %62 = arith.mulf %57, %61 : vector<2x8x8x8xf32>
    %63 = arith.addf %54, %62 : vector<2x8x8x8xf32>
    %c0_42 = arith.constant 0 : index
    %c1_43 = arith.constant 1 : index
    %c1_44 = arith.constant 1 : index
    %c0_45 = arith.constant 0 : index
    %c0_46 = arith.constant 0 : index
    %64 = vector.load %arg1[%c0_42, %c1_43, %c1_44, %c0_45, %c0_46] : memref<2x4x9x9x8xbf16, #tpu.memory_space<vmem>>, vector<2x1x8x8x8xbf16>
    %65 = vector.shape_cast %64 : vector<2x1x8x8x8xbf16> to vector<2x8x8x8xbf16>
    %66 = arith.extf %65 : vector<2x8x8x8xbf16> to vector<2x8x8x8xf32>
    %c7 = arith.constant 7 : index
    %c0_47 = arith.constant 0 : index
    %67 = vector.load %arg2[%c7, %c0_47] : memref<9x8xf32, #tpu.memory_space<vmem>>, vector<1x8xf32>
    %68 = vector.shape_cast %67 : vector<1x8xf32> to vector<8xf32>
    %69 = vector.shape_cast %68 : vector<8xf32> to vector<1x1x1x8xf32>
    %70 = vector.broadcast %69 : vector<1x1x1x8xf32> to vector<2x8x8x8xf32>
    %71 = arith.mulf %66, %70 : vector<2x8x8x8xf32>
    %72 = arith.addf %63, %71 : vector<2x8x8x8xf32>
    %c0_48 = arith.constant 0 : index
    %c0_49 = arith.constant 0 : index
    %c1_50 = arith.constant 1 : index
    %c1_51 = arith.constant 1 : index
    %c0_52 = arith.constant 0 : index
    %73 = vector.load %arg1[%c0_48, %c0_49, %c1_50, %c1_51, %c0_52] : memref<2x4x9x9x8xbf16, #tpu.memory_space<vmem>>, vector<2x1x8x8x8xbf16>
    %74 = vector.shape_cast %73 : vector<2x1x8x8x8xbf16> to vector<2x8x8x8xbf16>
    %75 = arith.extf %74 : vector<2x8x8x8xbf16> to vector<2x8x8x8xf32>
    %c8 = arith.constant 8 : index
    %c0_53 = arith.constant 0 : index
    %76 = vector.load %arg2[%c8, %c0_53] : memref<9x8xf32, #tpu.memory_space<vmem>>, vector<1x8xf32>
    %77 = vector.shape_cast %76 : vector<1x8xf32> to vector<8xf32>
    %78 = vector.shape_cast %77 : vector<8xf32> to vector<1x1x1x8xf32>
    %79 = vector.broadcast %78 : vector<1x1x1x8xf32> to vector<2x8x8x8xf32>
    %80 = arith.mulf %75, %79 : vector<2x8x8x8xf32>
    %81 = arith.addf %72, %80 : vector<2x8x8x8xf32>
    %c0_54 = arith.constant 0 : index
    %c0_55 = arith.constant 0 : index
    %82 = vector.load %arg3[%c0_54, %c0_55] : memref<1x8xf32, #tpu.memory_space<vmem>>, vector<1x8xf32>
    %83 = vector.shape_cast %82 : vector<1x8xf32> to vector<8xf32>
    %84 = vector.shape_cast %83 : vector<8xf32> to vector<1x1x1x8xf32>
    %85 = vector.broadcast %84 : vector<1x1x1x8xf32> to vector<2x8x8x8xf32>
    %86 = arith.addf %81, %85 : vector<2x8x8x8xf32>
    %cst_56 = arith.constant 0.000000e+00 : f32
    %87 = vector.broadcast %cst_56 : f32 to vector<2x8x8x8xf32>
    %88 = arith.cmpf ogt, %86, %87 : vector<2x8x8x8xf32>
    %cst_57 = arith.constant 2.000000e-01 : f32
    %89 = vector.broadcast %cst_57 : f32 to vector<2x8x8x8xf32>
    %90 = arith.mulf %89, %86 : vector<2x8x8x8xf32>
    %91 = arith.select %88, %86, %90 : vector<2x8x8x8xi1>, vector<2x8x8x8xf32>
    %92 = vector.shape_cast %91 : vector<2x8x8x8xf32> to vector<128x8xf32>
    %c0_58 = arith.constant 0 : index
    %c0_59 = arith.constant 0 : index
    %93 = vector.load %arg4[%c0_58, %c0_59] : memref<8x16xf32, #tpu.memory_space<vmem>>, vector<8x16xf32>
    %cst_60 = arith.constant dense<0.000000e+00> : vector<128x16xf32>
    %94 = tpu.matmul %92, %93, %cst_60 {dimension_numbers = #tpu.dot_dimension_numbers<[1], [0], [0], [1], [0, 0, 1, 1], [], []>} : vector<128x8xf32>, vector<8x16xf32>, vector<128x16xf32> -> vector<128x16xf32>
    %c0_61 = arith.constant 0 : index
    %c0_62 = arith.constant 0 : index
    %95 = vector.load %arg5[%c0_61, %c0_62] : memref<1x16xf32, #tpu.memory_space<vmem>>, vector<1x16xf32>
    %96 = vector.shape_cast %95 : vector<1x16xf32> to vector<16xf32>
    %97 = vector.shape_cast %96 : vector<16xf32> to vector<1x16xf32>
    %98 = vector.broadcast %97 : vector<1x16xf32> to vector<128x16xf32>
    %99 = arith.addf %94, %98 : vector<128x16xf32>
    %cst_63 = arith.constant 0.000000e+00 : f32
    %100 = vector.broadcast %cst_63 : f32 to vector<128x16xf32>
    %101 = arith.cmpf ogt, %99, %100 : vector<128x16xf32>
    %cst_64 = arith.constant 2.000000e-01 : f32
    %102 = vector.broadcast %cst_64 : f32 to vector<128x16xf32>
    %103 = arith.mulf %102, %99 : vector<128x16xf32>
    %104 = arith.select %101, %99, %103 : vector<128x16xi1>, vector<128x16xf32>
    %c0_65 = arith.constant 0 : index
    %c0_66 = arith.constant 0 : index
    %105 = vector.load %arg6[%c0_65, %c0_66] : memref<128x16xf32, #tpu.memory_space<vmem>>, vector<128x16xf32>
    tpu.vector_store %arg6[%c0_65, %c0_66], %104 {strides = array<i32>} : memref<128x16xf32, #tpu.memory_space<vmem>>, vector<128x16xf32>,
    return
  }
  func.func @transform_0(%arg0: i32) -> (i32, i32, i32, i32, i32) {
    %c0_i32 = arith.constant 0 : i32
    %c0_i32_0 = arith.constant 0 : i32
    %c0_i32_1 = arith.constant 0 : i32
    %c0_i32_2 = arith.constant 0 : i32
    %c0_i32_3 = arith.constant 0 : i32
    return %arg0, %c0_i32, %c0_i32_0, %c0_i32_1, %c0_i32_2 : i32, i32, i32, i32, i32
  }
  func.func @transform_1(%arg0: i32) -> (i32, i32) {
    %c0_i32 = arith.constant 0 : i32
    %c0_i32_0 = arith.constant 0 : i32
    %c0_i32_1 = arith.constant 0 : i32
    return %c0_i32, %c0_i32_0 : i32, i32
  }
  func.func @transform_2(%arg0: i32) -> (i32, i32) {
    %c0_i32 = arith.constant 0 : i32
    %c0_i32_0 = arith.constant 0 : i32
    %c0_i32_1 = arith.constant 0 : i32
    return %c0_i32, %c0_i32_0 : i32, i32
  }
  func.func @transform_3(%arg0: i32) -> (i32, i32) {
    %c0_i32 = arith.constant 0 : i32
    %c0_i32_0 = arith.constant 0 : i32
    %c0_i32_1 = arith.constant 0 : i32
    return %c0_i32, %c0_i32_0 : i32, i32
  }
  func.func @transform_4(%arg0: i32) -> (i32, i32) {
    %c0_i32 = arith.constant 0 : i32
    %c0_i32_0 = arith.constant 0 : i32
    %c0_i32_1 = arith.constant 0 : i32
    return %c0_i32, %c0_i32_0 : i32, i32
  }
  func.func @transform_5(%arg0: i32) -> (i32, i32) {
    %c0_i32 = arith.constant 0 : i32
    %c0_i32_0 = arith.constant 0 : i32
    return %arg0, %c0_i32 : i32, i32
  }
}

</mosaic_0001>

<llo_original>
// kernel: dsconv_forward.1
$region0: #{dsconv_forward.1}
  #allocation0 [shape = 'u32[]', space=smem, size = 0x4, offset = 0x4, fixed_abs, tag = 'smem constant byte address 0x4 - core index']
  #allocation1 [shape = 'u32[144,128]{1,0:T(1,128)}', space=vmem, size = 0x12000, scoped, tag = 'internal scratch']
  %s0 = inlined_call_operand.vmem [shape: bf16[2,4,9,9,8], index: 0, kind: input, shape index: {}]
  %s1 = inlined_call_operand.vmem [shape: f32[9,8], index: 1, kind: input, shape index: {}]
  %s2 = inlined_call_operand.vmem [shape: f32[1,8], index: 2, kind: input, shape index: {}]
  %s3 = inlined_call_operand.vmem [shape: f32[8,16], index: 3, kind: input, shape index: {}]
  %s4 = inlined_call_operand.vmem [shape: f32[1,16], index: 4, kind: input, shape index: {}]
  %s5 = inlined_call_operand.hbm [shape: f32[128,16], index: 5, kind: output, shape index: {}]
  %s6 = sld [smem:[#allocation0]]
  $region30: #{dsconv_forward.1} parent=0
    _
  %s8 = ssub.s32 1, %s6
  %s9 = scalar_select 0, %s8, %s6
  $region1: #{dsconv_forward.1} parent=0
    #allocation2 [shape = 'u8[65536]{0}', space=vmem, size = 0x10000, scoped, tag = 'output window, operand 0, single buffered']
    #allocation3 [shape = 's32[1]{0}', space=sflag, size = 0x4, scoped, tag = 'scoped memory for dsconv_forward.1']
    %10 = vsyncpa [#allocation3], 0
    // Predicated region
    $region2: #{dsconv_forward.1} parent=1 // pred_check
      _
    $region3: #{dsconv_forward.1} parent=1 // pred_check_branch
      %12 = sbr.rel (0) target = $region5
    $region4: #{dsconv_forward.1} parent=1 // pred_region
      _
    $region5: #{dsconv_forward.1} parent=1 // pred_fallthru
      _
    // Predicated region
    $region6: #{dsconv_forward.1} parent=1 // pred_check
      _
    $region7: #{dsconv_forward.1} parent=1 // pred_check_branch
      %14 = sbr.rel (0) target = $region9
    $region8: #{dsconv_forward.1} parent=1 // pred_region
      _
    $region9: #{dsconv_forward.1} parent=1 // pred_fallthru
      _
    // Predicated region
    $region10: #{dsconv_forward.1} parent=1 // pred_check
      _
    $region11: #{dsconv_forward.1} parent=1 // pred_check_branch
      %16 = sbr.rel (0) target = $region13
    $region12: #{dsconv_forward.1} parent=1 // pred_region
      _
    $region13: #{dsconv_forward.1} parent=1 // pred_fallthru
      _
    // Predicated region
    $region14: #{dsconv_forward.1} parent=1 // pred_check
      _
    $region15: #{dsconv_forward.1} parent=1 // pred_check_branch
      %18 = sbr.rel (0) target = $region17
    $region16: #{dsconv_forward.1} parent=1 // pred_region
      _
    $region17: #{dsconv_forward.1} parent=1 // pred_fallthru
      _
    // Predicated region
    $region18: #{dsconv_forward.1} parent=1 // pred_check
      _
    $region19: #{dsconv_forward.1} parent=1 // pred_check_branch
      %20 = sbr.rel (0) target = $region21
    $region20: #{dsconv_forward.1} parent=1 // pred_region
      _
    $region21: #{dsconv_forward.1} parent=1 // pred_fallthru
      _
    %v21 = vld [vmem:[%s0] sm:$0xf]
    %v22 = vld [vmem:[%s0 + $0x8] sm:$0xf]
    %v23 = vld [vmem:[%s0 + $0x10] sm:$0xf]
    %v24 = vld [vmem:[%s0 + $0x18] sm:$0xf]
    %v25 = vld [vmem:[%s0 + $0x20] sm:$0xf]
    %v26 = vld [vmem:[%s0 + $0x28] sm:$0xf]
    %v27 = vld [vmem:[%s0 + $0x30] sm:$0xf]
    %v28 = vld [vmem:[%s0 + $0x38] sm:$0xf]
    %v29 = vld [vmem:[%s0 + $0x120] sm:$0xf]
    %v30 = vld [vmem:[%s0 + $0x128] sm:$0xf]
    %v31 = vld [vmem:[%s0 + $0x130] sm:$0xf]
    %v32 = vld [vmem:[%s0 + $0x138] sm:$0xf]
    %v33 = vld [vmem:[%s0 + $0x140] sm:$0xf]
    %v34 = vld [vmem:[%s0 + $0x148] sm:$0xf]
    %v35 = vld [vmem:[%s0 + $0x150] sm:$0xf]
    %v36 = vld [vmem:[%s0 + $0x158] sm:$0xf]
    %v37 = vunpack.c.l.bf16 %v21
    %v38 = vunpack.c.l.bf16 %v22
    %v39 = vunpack.c.l.bf16 %v23
    %v40 = vunpack.c.l.bf16 %v24
    %v41 = vunpack.c.l.bf16 %v25
    %v42 = vunpack.c.l.bf16 %v26
    %v43 = vunpack.c.l.bf16 %v27
    %v44 = vunpack.c.l.bf16 %v28
    %v45 = vunpack.c.l.bf16 %v29
    %v46 = vunpack.c.l.bf16 %v30
    %v47 = vunpack.c.l.bf16 %v31
    %v48 = vunpack.c.l.bf16 %v32
    %v49 = vunpack.c.l.bf16 %v33
    %v50 = vunpack.c.l.bf16 %v34
    %v51 = vunpack.c.l.bf16 %v35
    %v52 = vunpack.c.l.bf16 %v36
    %v53 = vld [vmem:[%s1] sm:$0x1]
    %v54 = vlaneseq
    %v55 = vshrl.u32 %v54, 7
    %v56 = vsub.s32 0, %v55
    %v57 = vrot.slane %v53, %v56
    %v58 = vmul.f32 %v37, %v57
    %v59 = vmul.f32 %v38, %v57
    %v60 = vmul.f32 %v39, %v57
    %v61 = vmul.f32 %v40, %v57
    %v62 = vmul.f32 %v41, %v57
    %v63 = vmul.f32 %v42, %v57
    %v64 = vmul.f32 %v43, %v57
    %v65 = vmul.f32 %v44, %v57
    %v66 = vmul.f32 %v45, %v57
    %v67 = vmul.f32 %v46, %v57
    %v68 = vmul.f32 %v47, %v57
    %v69 = vmul.f32 %v48, %v57
    %v70 = vmul.f32 %v49, %v57
    %v71 = vmul.f32 %v50, %v57
    %v72 = vmul.f32 %v51, %v57
    %v73 = vmul.f32 %v52, %v57
    %v74 = vadd.f32 %v58, 0.0
    %v75 = vadd.f32 %v59, 0.0
    %v76 = vadd.f32 %v60, 0.0
    %v77 = vadd.f32 %v61, 0.0
    %v78 = vadd.f32 %v62, 0.0
    %v79 = vadd.f32 %v63, 0.0
    %v80 = vadd.f32 %v64, 0.0
    %v81 = vadd.f32 %v65, 0.0
    %v82 = vadd.f32 %v66, 0.0
    %v83 = vadd.f32 %v67, 0.0
    %v84 = vadd.f32 %v68, 0.0
    %v85 = vadd.f32 %v69, 0.0
    %v86 = vadd.f32 %v70, 0.0
    %v87 = vadd.f32 %v71, 0.0
    %v88 = vadd.f32 %v72, 0.0
    %v89 = vadd.f32 %v73, 0.0
    %s90 = scalar_lea.vmem %s0, 72
    %v91 = vld [vmem:[%s90] sm:$0xf]
    %v92 = vld [vmem:[%s90 + $0x8] sm:$0xf]
    %v93 = vld [vmem:[%s90 + $0x10] sm:$0xf]
    %v94 = vld [vmem:[%s90 + $0x18] sm:$0xf]
    %v95 = vld [vmem:[%s90 + $0x20] sm:$0xf]
    %v96 = vld [vmem:[%s90 + $0x28] sm:$0xf]
    %v97 = vld [vmem:[%s90 + $0x30] sm:$0xf]
    %v98 = vld [vmem:[%s90 + $0x38] sm:$0xf]
    %v99 = vld [vmem:[%s90 + $0x120] sm:$0xf]
    %v100 = vld [vmem:[%s90 + $0x128] sm:$0xf]
    %v101 = vld [vmem:[%s90 + $0x130] sm:$0xf]
    %v102 = vld [vmem:[%s90 + $0x138] sm:$0xf]
    %v103 = vld [vmem:[%s90 + $0x140] sm:$0xf]
    %v104 = vld [vmem:[%s90 + $0x148] sm:$0xf]
    %v105 = vld [vmem:[%s90 + $0x150] sm:$0xf]
    %v106 = vld [vmem:[%s90 + $0x158] sm:$0xf]
    %v107 = vunpack.c.l.bf16 %v91
    %v108 = vunpack.c.l.bf16 %v92
    %v109 = vunpack.c.l.bf16 %v93
    %v110 = vunpack.c.l.bf16 %v94
    %v111 = vunpack.c.l.bf16 %v95
    %v112 = vunpack.c.l.bf16 %v96
    %v113 = vunpack.c.l.bf16 %v97
    %v114 = vunpack.c.l.bf16 %v98
    %v115 = vunpack.c.l.bf16 %v99
    %v116 = vunpack.c.l.bf16 %v100
    %v117 = vunpack.c.l.bf16 %v101
    %v118 = vunpack.c.l.bf16 %v102
    %v119 = vunpack.c.l.bf16 %v103
    %v120 = vunpack.c.l.bf16 %v104
    %v121 = vunpack.c.l.bf16 %v105
    %v122 = vunpack.c.l.bf16 %v106
    %v123 = vld [vmem:[%s1 + $0x1] sm:$0x1]
    %v124 = vlaneseq
    %v125 = vshrl.u32 %v124, 7
    %v126 = vsub.s32 0, %v125
    %v127 = vrot.slane %v123, %v126
    %v128 = vmul.f32 %v107, %v127
    %v129 = vmul.f32 %v108, %v127
    %v130 = vmul.f32 %v109, %v127
    %v131 = vmul.f32 %v110, %v127
    %v132 = vmul.f32 %v111, %v127
    %v133 = vmul.f32 %v112, %v127
    %v134 = vmul.f32 %v113, %v127
    %v135 = vmul.f32 %v114, %v127
    %v136 = vmul.f32 %v115, %v127
    %v137 = vmul.f32 %v116, %v127
    %v138 = vmul.f32 %v117, %v127
    %v139 = vmul.f32 %v118, %v127
    %v140 = vmul.f32 %v119, %v127
    %v141 = vmul.f32 %v120, %v127
    %v142 = vmul.f32 %v121, %v127
    %v143 = vmul.f32 %v122, %v127
    %v144 = vadd.f32 %v74, %v128
    %v145 = vadd.f32 %v75, %v129
    %v146 = vadd.f32 %v76, %v130
    %v147 = vadd.f32 %v77, %v131
    %v148 = vadd.f32 %v78, %v132
    %v149 = vadd.f32 %v79, %v133
    %v150 = vadd.f32 %v80, %v134
    %v151 = vadd.f32 %v81, %v135
    %v152 = vadd.f32 %v82, %v136
    %v153 = vadd.f32 %v83, %v137
    %v154 = vadd.f32 %v84, %v138
    %v155 = vadd.f32 %v85, %v139
    %v156 = vadd.f32 %v86, %v140
    %v157 = vadd.f32 %v87, %v141
    %v158 = vadd.f32 %v88, %v142
    %v159 = vadd.f32 %v89, %v143
    %v160 = vld [vmem:[%s0 + $0x4] sm:$0x1]
    %v161 = vld [vmem:[%s0 + $0xc] sm:$0x1]
    %v162 = vld [vmem:[%s0 + $0x14] sm:$0x1]
    %v163 = vld [vmem:[%s0 + $0x1c] sm:$0x1]
    %v164 = vld [vmem:[%s0 + $0x24] sm:$0x1]
    %v165 = vld [vmem:[%s0 + $0x2c] sm:$0x1]
    %v166 = vld [vmem:[%s0 + $0x34] sm:$0x1]
    %v167 = vld [vmem:[%s0 + $0x3c] sm:$0x1]
    %v168 = vld [vmem:[%s0 + $0x124] sm:$0x1]
    %v169 = vld [vmem:[%s0 + $0x12c] sm:$0x1]
    %v170 = vld [vmem:[%s0 + $0x134] sm:$0x1]
    %v171 = vld [vmem:[%s0 + $0x13c] sm:$0x1]
    %v172 = vld [vmem:[%s0 + $0x144] sm:$0x1]
    %v173 = vld [vmem:[%s0 + $0x14c] sm:$0x1]
    %v174 = vld [vmem:[%s0 + $0x154] sm:$0x1]
    %v175 = vld [vmem:[%s0 + $0x15c] sm:$0x1]
    %v176 = vunpack.c.l.bf16 %v160
    %v177 = vunpack.c.l.bf16 %v161
    %v178 = vunpack.c.l.bf16 %v162
    %v179 = vunpack.c.l.bf16 %v163
    %v180 = vunpack.c.l.bf16 %v164
    %v181 = vunpack.c.l.bf16 %v165
    %v182 = vunpack.c.l.bf16 %v166
    %v183 = vunpack.c.l.bf16 %v167
    %v184 = vunpack.c.l.bf16 %v168
    %v185 = vunpack.c.l.bf16 %v169
    %v186 = vunpack.c.l.bf16 %v170
    %v187 = vunpack.c.l.bf16 %v171
    %v188 = vunpack.c.l.bf16 %v172
    %v189 = vunpack.c.l.bf16 %v173
    %v190 = vunpack.c.l.bf16 %v174
    %v191 = vunpack.c.l.bf16 %v175
    %v192 = vld [vmem:[%s1 + $0x2] sm:$0x1]
    %v193 = vlaneseq
    %v194 = vshrl.u32 %v193, 7
    %v195 = vsub.s32 0, %v194
    %v196 = vrot.slane %v192, %v195
    %v197 = vmul.f32 %v37, %v196
    %v198 = vmul.f32 %v176, %v196
    %v199 = vmul.f32 %v38, %v196
    %v200 = vmul.f32 %v177, %v196
    %v201 = vmul.f32 %v39, %v196
    %v202 = vmul.f32 %v178, %v196
    %v203 = vmul.f32 %v40, %v196
    %v204 = vmul.f32 %v179, %v196
    %v205 = vmul.f32 %v41, %v196
    %v206 = vmul.f32 %v180, %v196
    %v207 = vmul.f32 %v42, %v196
    %v208 = vmul.f32 %v181, %v196
    %v209 = vmul.f32 %v43, %v196
    %v210 = vmul.f32 %v182, %v196
    %v211 = vmul.f32 %v44, %v196
    %v212 = vmul.f32 %v183, %v196
    %v213 = vmul.f32 %v45, %v196
    %v214 = vmul.f32 %v184, %v196
    %v215 = vmul.f32 %v46, %v196
    %v216 = vmul.f32 %v185, %v196
    %v217 = vmul.f32 %v47, %v196
    %v218 = vmul.f32 %v186, %v196
    %v219 = vmul.f32 %v48, %v196
    %v220 = vmul.f32 %v187, %v196
    %v221 = vmul.f32 %v49, %v196
    %v222 = vmul.f32 %v188, %v196
    %v223 = vmul.f32 %v50, %v196
    %v224 = vmul.f32 %v189, %v196
    %v225 = vmul.f32 %v51, %v196
    %v226 = vmul.f32 %v190, %v196
    %v227 = vmul.f32 %v52, %v196
    %v228 = vmul.f32 %v191, %v196
    %vm261 = vcmask 1046528
    %v262 = vrot.slane %v197, 1
    %v263 = vrot.slane %v198, 1
    %v264 = vsel %vm261, %v262, %v263
    %v265 = vrot.slane %v199, 1
    %v266 = vrot.slane %v200, 1
    %v267 = vsel %vm261, %v265, %v266
    %v268 = vrot.slane %v201, 1
    %v269 = vrot.slane %v202, 1
    %v270 = vsel %vm261, %v268, %v269
    %v271 = vrot.slane %v203, 1
    %v272 = vrot.slane %v204, 1
    %v273 = vsel %vm261, %v271, %v272
    %v274 = vrot.slane %v205, 1
    %v275 = vrot.slane %v206, 1
    %v276 = vsel %vm261, %v274, %v275
    %v277 = vrot.slane %v207, 1
    %v278 = vrot.slane %v208, 1
    %v279 = vsel %vm261, %v277, %v278
    %v280 = vrot.slane %v209, 1
    %v281 = vrot.slane %v210, 1
    %v282 = vsel %vm261, %v280, %v281
    %v283 = vrot.slane %v211, 1
    %v284 = vrot.slane %v212, 1
    %v285 = vsel %vm261, %v283, %v284
    %v286 = vrot.slane %v213, 1
    %v287 = vrot.slane %v214, 1
    %v288 = vsel %vm261, %v286, %v287
    %v289 = vrot.slane %v215, 1
    %v290 = vrot.slane %v216, 1
    %v291 = vsel %vm261, %v289, %v290
    %v292 = vrot.slane %v217, 1
    %v293 = vrot.slane %v218, 1
    %v294 = vsel %vm261, %v292, %v293
    %v295 = vrot.slane %v219, 1
    %v296 = vrot.slane %v220, 1
    %v297 = vsel %vm261, %v295, %v296
    %v298 = vrot.slane %v221, 1
    %v299 = vrot.slane %v222, 1
    %v300 = vsel %vm261, %v298, %v299
    %v301 = vrot.slane %v223, 1
    %v302 = vrot.slane %v224, 1
    %v303 = vsel %vm261, %v301, %v302
    %v304 = vrot.slane %v225, 1
    %v305 = vrot.slane %v226, 1
    %v306 = vsel %vm261, %v304, %v305
    %v307 = vrot.slane %v227, 1
    %v308 = vrot.slane %v228, 1
    %v309 = vsel %vm261, %v307, %v308
    %v326 = vadd.f32 %v144, %v264
    %v327 = vadd.f32 %v145, %v267
    %v328 = vadd.f32 %v146, %v270
    %v329 = vadd.f32 %v147, %v273
    %v330 = vadd.f32 %v148, %v276
    %v331 = vadd.f32 %v149, %v279
    %v332 = vadd.f32 %v150, %v282
    %v333 = vadd.f32 %v151, %v285
    %v334 = vadd.f32 %v152, %v288
    %v335 = vadd.f32 %v153, %v291
    %v336 = vadd.f32 %v154, %v294
    %v337 = vadd.f32 %v155, %v297
    %v338 = vadd.f32 %v156, %v300
    %v339 = vadd.f32 %v157, %v303
    %v340 = vadd.f32 %v158, %v306
    %v341 = vadd.f32 %v159, %v309
    %s342 = scalar_lea.vmem %s0, 144
    %v343 = vld [vmem:[%s342] sm:$0xf]
    %v344 = vld [vmem:[%s342 + $0x8] sm:$0xf]
    %v345 = vld [vmem:[%s342 + $0x10] sm:$0xf]
    %v346 = vld [vmem:[%s342 + $0x18] sm:$0xf]
    %v347 = vld [vmem:[%s342 + $0x20] sm:$0xf]
    %v348 = vld [vmem:[%s342 + $0x28] sm:$0xf]
    %v349 = vld [vmem:[%s342 + $0x30] sm:$0xf]
    %v350 = vld [vmem:[%s342 + $0x38] sm:$0xf]
    %v351 = vld [vmem:[%s342 + $0x120] sm:$0xf]
    %v352 = vld [vmem:[%s342 + $0x128] sm:$0xf]
    %v353 = vld [vmem:[%s342 + $0x130] sm:$0xf]
    %v354 = vld [vmem:[%s342 + $0x138] sm:$0xf]
    %v355 = vld [vmem:[%s342 + $0x140] sm:$0xf]
    %v356 = vld [vmem:[%s342 + $0x148] sm:$0xf]
    %v357 = vld [vmem:[%s342 + $0x150] sm:$0xf]
    %v358 = vld [vmem:[%s342 + $0x158] sm:$0xf]
    %v359 = vunpack.c.l.bf16 %v343
    %v360 = vunpack.c.l.bf16 %v344
    %v361 = vunpack.c.l.bf16 %v345
    %v362 = vunpack.c.l.bf16 %v346
    %v363 = vunpack.c.l.bf16 %v347
    %v364 = vunpack.c.l.bf16 %v348
    %v365 = vunpack.c.l.bf16 %v349
    %v366 = vunpack.c.l.bf16 %v350
    %v367 = vunpack.c.l.bf16 %v351
    %v368 = vunpack.c.l.bf16 %v352
    %v369 = vunpack.c.l.bf16 %v353
    %v370 = vunpack.c.l.bf16 %v354
    %v371 = vunpack.c.l.bf16 %v355
    %v372 = vunpack.c.l.bf16 %v356
    %v373 = vunpack.c.l.bf16 %v357
    %v374 = vunpack.c.l.bf16 %v358
    %v375 = vld [vmem:[%s1 + $0x3] sm:$0x1]
    %v376 = vlaneseq
    %v377 = vshrl.u32 %v376, 7
    %v378 = vsub.s32 0, %v377
    %v379 = vrot.slane %v375, %v378
    %v380 = vmul.f32 %v359, %v379
    %v381 = vmul.f32 %v360, %v379
    %v382 = vmul.f32 %v361, %v379
    %v383 = vmul.f32 %v362, %v379
    %v384 = vmul.f32 %v363, %v379
    %v385 = vmul.f32 %v364, %v379
    %v386 = vmul.f32 %v365, %v379
    %v387 = vmul.f32 %v366, %v379
    %v388 = vmul.f32 %v367, %v379
    %v389 = vmul.f32 %v368, %v379
    %v390 = vmul.f32 %v369, %v379
    %v391 = vmul.f32 %v370, %v379
    %v392 = vmul.f32 %v371, %v379
    %v393 = vmul.f32 %v372, %v379
    %v394 = vmul.f32 %v373, %v379
    %v395 = vmul.f32 %v374, %v379
    %v396 = vadd.f32 %v326, %v380
    %v397 = vadd.f32 %v327, %v381
    %v398 = vadd.f32 %v328, %v382
    %v399 = vadd.f32 %v329, %v383
    %v400 = vadd.f32 %v330, %v384
    %v401 = vadd.f32 %v331, %v385
    %v402 = vadd.f32 %v332, %v386
    %v403 = vadd.f32 %v333, %v387
    %v404 = vadd.f32 %v334, %v388
    %v405 = vadd.f32 %v335, %v389
    %v406 = vadd.f32 %v336, %v390
    %v407 = vadd.f32 %v337, %v391
    %v408 = vadd.f32 %v338, %v392
    %v409 = vadd.f32 %v339, %v393
    %v410 = vadd.f32 %v340, %v394
    %v411 = vadd.f32 %v341, %v395
    %s412 = scalar_lea.vmem %s0, 216
    %v413 = vld [vmem:[%s412] sm:$0xf]
    %v414 = vld [vmem:[%s412 + $0x8] sm:$0xf]
    %v415 = vld [vmem:[%s412 + $0x10] sm:$0xf]
    %v416 = vld [vmem:[%s412 + $0x18] sm:$0xf]
    %v417 = vld [vmem:[%s412 + $0x20] sm:$0xf]
    %v418 = vld [vmem:[%s412 + $0x28] sm:$0xf]
    %v419 = vld [vmem:[%s412 + $0x30] sm:$0xf]
    %v420 = vld [vmem:[%s412 + $0x38] sm:$0xf]
    %v421 = vld [vmem:[%s412 + $0x120] sm:$0xf]
    %v422 = vld [vmem:[%s412 + $0x128] sm:$0xf]
    %v423 = vld [vmem:[%s412 + $0x130] sm:$0xf]
    %v424 = vld [vmem:[%s412 + $0x138] sm:$0xf]
    %v425 = vld [vmem:[%s412 + $0x140] sm:$0xf]
    %v426 = vld [vmem:[%s412 + $0x148] sm:$0xf]
    %v427 = vld [vmem:[%s412 + $0x150] sm:$0xf]
    %v428 = vld [vmem:[%s412 + $0x158] sm:$0xf]
    %v429 = vunpack.c.l.bf16 %v413
    %v430 = vunpack.c.l.bf16 %v414
    %v431 = vunpack.c.l.bf16 %v415
    %v432 = vunpack.c.l.bf16 %v416
    %v433 = vunpack.c.l.bf16 %v417
    %v434 = vunpack.c.l.bf16 %v418
    %v435 = vunpack.c.l.bf16 %v419
    %v436 = vunpack.c.l.bf16 %v420
    %v437 = vunpack.c.l.bf16 %v421
    %v438 = vunpack.c.l.bf16 %v422
    %v439 = vunpack.c.l.bf16 %v423
    %v440 = vunpack.c.l.bf16 %v424
    %v441 = vunpack.c.l.bf16 %v425
    %v442 = vunpack.c.l.bf16 %v426
    %v443 = vunpack.c.l.bf16 %v427
    %v444 = vunpack.c.l.bf16 %v428
    %v445 = vld [vmem:[%s1 + $0x4] sm:$0x1]
    %v446 = vlaneseq
    %v447 = vshrl.u32 %v446, 7
    %v448 = vsub.s32 0, %v447
    %v449 = vrot.slane %v445, %v448
    %v450 = vmul.f32 %v429, %v449
    %v451 = vmul.f32 %v430, %v449
    %v452 = vmul.f32 %v431, %v449
    %v453 = vmul.f32 %v432, %v449
    %v454 = vmul.f32 %v433, %v449
    %v455 = vmul.f32 %v434, %v449
    %v456 = vmul.f32 %v435, %v449
    %v457 = vmul.f32 %v436, %v449
    %v458 = vmul.f32 %v437, %v449
    %v459 = vmul.f32 %v438, %v449
    %v460 = vmul.f32 %v439, %v449
    %v461 = vmul.f32 %v440, %v449
    %v462 = vmul.f32 %v441, %v449
    %v463 = vmul.f32 %v442, %v449
    %v464 = vmul.f32 %v443, %v449
    %v465 = vmul.f32 %v444, %v449
    %v466 = vadd.f32 %v396, %v450
    %v467 = vadd.f32 %v397, %v451
    %v468 = vadd.f32 %v398, %v452
    %v469 = vadd.f32 %v399, %v453
    %v470 = vadd.f32 %v400, %v454
    %v471 = vadd.f32 %v401, %v455
    %v472 = vadd.f32 %v402, %v456
    %v473 = vadd.f32 %v403, %v457
    %v474 = vadd.f32 %v404, %v458
    %v475 = vadd.f32 %v405, %v459
    %v476 = vadd.f32 %v406, %v460
    %v477 = vadd.f32 %v407, %v461
    %v478 = vadd.f32 %v408, %v462
    %v479 = vadd.f32 %v409, %v463
    %v480 = vadd.f32 %v410, %v464
    %v481 = vadd.f32 %v411, %v465
    %v482 = vld [vmem:[%s342 + $0x4] sm:$0x1]
    %v483 = vld [vmem:[%s342 + $0xc] sm:$0x1]
    %v484 = vld [vmem:[%s342 + $0x14] sm:$0x1]
    %v485 = vld [vmem:[%s342 + $0x1c] sm:$0x1]
    %v486 = vld [vmem:[%s342 + $0x24] sm:$0x1]
    %v487 = vld [vmem:[%s342 + $0x2c] sm:$0x1]
    %v488 = vld [vmem:[%s342 + $0x34] sm:$0x1]
    %v489 = vld [vmem:[%s342 + $0x3c] sm:$0x1]
    %v490 = vld [vmem:[%s342 + $0x124] sm:$0x1]
    %v491 = vld [vmem:[%s342 + $0x12c] sm:$0x1]
    %v492 = vld [vmem:[%s342 + $0x134] sm:$0x1]
    %v493 = vld [vmem:[%s342 + $0x13c] sm:$0x1]
    %v494 = vld [vmem:[%s342 + $0x144] sm:$0x1]
    %v495 = vld [vmem:[%s342 + $0x14c] sm:$0x1]
    %v496 = vld [vmem:[%s342 + $0x154] sm:$0x1]
    %v497 = vld [vmem:[%s342 + $0x15c] sm:$0x1]
    %v498 = vunpack.c.l.bf16 %v482
    %v499 = vunpack.c.l.bf16 %v483
    %v500 = vunpack.c.l.bf16 %v484
    %v501 = vunpack.c.l.bf16 %v485
    %v502 = vunpack.c.l.bf16 %v486
    %v503 = vunpack.c.l.bf16 %v487
    %v504 = vunpack.c.l.bf16 %v488
    %v505 = vunpack.c.l.bf16 %v489
    %v506 = vunpack.c.l.bf16 %v490
    %v507 = vunpack.c.l.bf16 %v491
    %v508 = vunpack.c.l.bf16 %v492
    %v509 = vunpack.c.l.bf16 %v493
    %v510 = vunpack.c.l.bf16 %v494
    %v511 = vunpack.c.l.bf16 %v495
    %v512 = vunpack.c.l.bf16 %v496
    %v513 = vunpack.c.l.bf16 %v497
    %v514 = vld [vmem:[%s1 + $0x5] sm:$0x1]
    %v515 = vlaneseq
    %v516 = vshrl.u32 %v515, 7
    %v517 = vsub.s32 0, %v516
    %v518 = vrot.slane %v514, %v517
    %v519 = vmul.f32 %v359, %v518
    %v520 = vmul.f32 %v498, %v518
    %v521 = vmul.f32 %v360, %v518
    %v522 = vmul.f32 %v499, %v518
    %v523 = vmul.f32 %v361, %v518
    %v524 = vmul.f32 %v500, %v518
    %v525 = vmul.f32 %v362, %v518
    %v526 = vmul.f32 %v501, %v518
    %v527 = vmul.f32 %v363, %v518
    %v528 = vmul.f32 %v502, %v518
    %v529 = vmul.f32 %v364, %v518
    %v530 = vmul.f32 %v503, %v518
    %v531 = vmul.f32 %v365, %v518
    %v532 = vmul.f32 %v504, %v518
    %v533 = vmul.f32 %v366, %v518
    %v534 = vmul.f32 %v505, %v518
    %v535 = vmul.f32 %v367, %v518
    %v536 = vmul.f32 %v506, %v518
    %v537 = vmul.f32 %v368, %v518
    %v538 = vmul.f32 %v507, %v518
    %v539 = vmul.f32 %v369, %v518
    %v540 = vmul.f32 %v508, %v518
    %v541 = vmul.f32 %v370, %v518
    %v542 = vmul.f32 %v509, %v518
    %v543 = vmul.f32 %v371, %v518
    %v544 = vmul.f32 %v510, %v518
    %v545 = vmul.f32 %v372, %v518
    %v546 = vmul.f32 %v511, %v518
    %v547 = vmul.f32 %v373, %v518
    %v548 = vmul.f32 %v512, %v518
    %v549 = vmul.f32 %v374, %v518
    %v550 = vmul.f32 %v513, %v518
    %v583 = vrot.slane %v519, 1
    %v584 = vrot.slane %v520, 1
    %v585 = vsel %vm261, %v583, %v584
    %v586 = vrot.slane %v521, 1
    %v587 = vrot.slane %v522, 1
    %v588 = vsel %vm261, %v586, %v587
    %v589 = vrot.slane %v523, 1
    %v590 = vrot.slane %v524, 1
    %v591 = vsel %vm261, %v589, %v590
    %v592 = vrot.slane %v525, 1
    %v593 = vrot.slane %v526, 1
    %v594 = vsel %vm261, %v592, %v593
    %v595 = vrot.slane %v527, 1
    %v596 = vrot.slane %v528, 1
    %v597 = vsel %vm261, %v595, %v596
    %v598 = vrot.slane %v529, 1
    %v599 = vrot.slane %v530, 1
    %v600 = vsel %vm261, %v598, %v599
    %v601 = vrot.slane %v531, 1
    %v602 = vrot.slane %v532, 1
    %v603 = vsel %vm261, %v601, %v602
    %v604 = vrot.slane %v533, 1
    %v605 = vrot.slane %v534, 1
    %v606 = vsel %vm261, %v604, %v605
    %v607 = vrot.slane %v535, 1
    %v608 = vrot.slane %v536, 1
    %v609 = vsel %vm261, %v607, %v608
    %v610 = vrot.slane %v537, 1
    %v611 = vrot.slane %v538, 1
    %v612 = vsel %vm261, %v610, %v611
    %v613 = vrot.slane %v539, 1
    %v614 = vrot.slane %v540, 1
    %v615 = vsel %vm261, %v613, %v614
    %v616 = vrot.slane %v541, 1
    %v617 = vrot.slane %v542, 1
    %v618 = vsel %vm261, %v616, %v617
    %v619 = vrot.slane %v543, 1
    %v620 = vrot.slane %v544, 1
    %v621 = vsel %vm261, %v619, %v620
    %v622 = vrot.slane %v545, 1
    %v623 = vrot.slane %v546, 1
    %v624 = vsel %vm261, %v622, %v623
    %v625 = vrot.slane %v547, 1
    %v626 = vrot.slane %v548, 1
    %v627 = vsel %vm261, %v625, %v626
    %v628 = vrot.slane %v549, 1
    %v629 = vrot.slane %v550, 1
    %v630 = vsel %vm261, %v628, %v629
    %v647 = vadd.f32 %v466, %v585
    %v648 = vadd.f32 %v467, %v588
    %v649 = vadd.f32 %v468, %v591
    %v650 = vadd.f32 %v469, %v594
    %v651 = vadd.f32 %v470, %v597
    %v652 = vadd.f32 %v471, %v600
    %v653 = vadd.f32 %v472, %v603
    %v654 = vadd.f32 %v473, %v606
    %v655 = vadd.f32 %v474, %v609
    %v656 = vadd.f32 %v475, %v612
    %v657 = vadd.f32 %v476, %v615
    %v658 = vadd.f32 %v477, %v618
    %v659 = vadd.f32 %v478, %v621
    %v660 = vadd.f32 %v479, %v624
    %v661 = vadd.f32 %v480, %v627
    %v662 = vadd.f32 %v481, %v630
    %s663 = scalar_lea.vmem %s0, 8
    %v664 = vld [vmem:[%s663] sm:$0xf]
    %v665 = vld [vmem:[%s663 + $0x8] sm:$0xf]
    %v666 = vld [vmem:[%s663 + $0x10] sm:$0xf]
    %v667 = vld [vmem:[%s663 + $0x18] sm:$0xf]
    %v668 = vld [vmem:[%s663 + $0x20] sm:$0xf]
    %v669 = vld [vmem:[%s663 + $0x28] sm:$0xf]
    %v670 = vld [vmem:[%s663 + $0x30] sm:$0xf]
    %v671 = vld [vmem:[%s663 + $0x38] sm:$0xf]
    %v672 = vld [vmem:[%s663 + $0x120] sm:$0xf]
    %v673 = vld [vmem:[%s663 + $0x128] sm:$0xf]
    %v674 = vld [vmem:[%s663 + $0x130] sm:$0xf]
    %v675 = vld [vmem:[%s663 + $0x138] sm:$0xf]
    %v676 = vld [vmem:[%s663 + $0x140] sm:$0xf]
    %v677 = vld [vmem:[%s663 + $0x148] sm:$0xf]
    %v678 = vld [vmem:[%s663 + $0x150] sm:$0xf]
    %v679 = vld [vmem:[%s663 + $0x158] sm:$0xf]
    %v680 = vunpack.c.l.bf16 %v664
    %v681 = vunpack.c.l.bf16 %v665
    %v682 = vunpack.c.l.bf16 %v666
    %v683 = vunpack.c.l.bf16 %v667
    %v684 = vunpack.c.l.bf16 %v668
    %v685 = vunpack.c.l.bf16 %v669
    %v686 = vunpack.c.l.bf16 %v670
    %v687 = vunpack.c.l.bf16 %v671
    %v688 = vunpack.c.l.bf16 %v672
    %v689 = vunpack.c.l.bf16 %v673
    %v690 = vunpack.c.l.bf16 %v674
    %v691 = vunpack.c.l.bf16 %v675
    %v692 = vunpack.c.l.bf16 %v676
    %v693 = vunpack.c.l.bf16 %v677
    %v694 = vunpack.c.l.bf16 %v678
    %v695 = vunpack.c.l.bf16 %v679
    %v696 = vld [vmem:[%s1 + $0x6] sm:$0x1]
    %v697 = vlaneseq
    %v698 = vshrl.u32 %v697, 7
    %v699 = vsub.s32 0, %v698
    %v700 = vrot.slane %v696, %v699
    %v701 = vmul.f32 %v680, %v700
    %v702 = vmul.f32 %v681, %v700
    %v703 = vmul.f32 %v682, %v700
    %v704 = vmul.f32 %v683, %v700
    %v705 = vmul.f32 %v684, %v700
    %v706 = vmul.f32 %v685, %v700
    %v707 = vmul.f32 %v686, %v700
    %v708 = vmul.f32 %v687, %v700
    %v709 = vmul.f32 %v688, %v700
    %v710 = vmul.f32 %v689, %v700
    %v711 = vmul.f32 %v690, %v700
    %v712 = vmul.f32 %v691, %v700
    %v713 = vmul.f32 %v692, %v700
    %v714 = vmul.f32 %v693, %v700
    %v715 = vmul.f32 %v694, %v700
    %v716 = vmul.f32 %v695, %v700
    %v717 = vadd.f32 %v647, %v701
    %v718 = vadd.f32 %v648, %v702
    %v719 = vadd.f32 %v649, %v703
    %v720 = vadd.f32 %v650, %v704
    %v721 = vadd.f32 %v651, %v705
    %v722 = vadd.f32 %v652, %v706
    %v723 = vadd.f32 %v653, %v707
    %v724 = vadd.f32 %v654, %v708
    %v725 = vadd.f32 %v655, %v709
    %v726 = vadd.f32 %v656, %v710
    %v727 = vadd.f32 %v657, %v711
    %v728 = vadd.f32 %v658, %v712
    %v729 = vadd.f32 %v659, %v713
    %v730 = vadd.f32 %v660, %v714
    %v731 = vadd.f32 %v661, %v715
    %v732 = vadd.f32 %v662, %v716
    %s733 = scalar_lea.vmem %s0, 80
    %v734 = vld [vmem:[%s733] sm:$0xf]
    %v735 = vld [vmem:[%s733 + $0x8] sm:$0xf]
    %v736 = vld [vmem:[%s733 + $0x10] sm:$0xf]
    %v737 = vld [vmem:[%s733 + $0x18] sm:$0xf]
    %v738 = vld [vmem:[%s733 + $0x20] sm:$0xf]
    %v739 = vld [vmem:[%s733 + $0x28] sm:$0xf]
    %v740 = vld [vmem:[%s733 + $0x30] sm:$0xf]
    %v741 = vld [vmem:[%s733 + $0x38] sm:$0xf]
    %v742 = vld [vmem:[%s733 + $0x120] sm:$0xf]
    %v743 = vld [vmem:[%s733 + $0x128] sm:$0xf]
    %v744 = vld [vmem:[%s733 + $0x130] sm:$0xf]
    %v745 = vld [vmem:[%s733 + $0x138] sm:$0xf]
    %v746 = vld [vmem:[%s733 + $0x140] sm:$0xf]
    %v747 = vld [vmem:[%s733 + $0x148] sm:$0xf]
    %v748 = vld [vmem:[%s733 + $0x150] sm:$0xf]
    %v749 = vld [vmem:[%s733 + $0x158] sm:$0xf]
    %v750 = vunpack.c.l.bf16 %v734
    %v751 = vunpack.c.l.bf16 %v735
    %v752 = vunpack.c.l.bf16 %v736
    %v753 = vunpack.c.l.bf16 %v737
    %v754 = vunpack.c.l.bf16 %v738
    %v755 = vunpack.c.l.bf16 %v739
    %v756 = vunpack.c.l.bf16 %v740
    %v757 = vunpack.c.l.bf16 %v741
    %v758 = vunpack.c.l.bf16 %v742
    %v759 = vunpack.c.l.bf16 %v743
    %v760 = vunpack.c.l.bf16 %v744
    %v761 = vunpack.c.l.bf16 %v745
    %v762 = vunpack.c.l.bf16 %v746
    %v763 = vunpack.c.l.bf16 %v747
    %v764 = vunpack.c.l.bf16 %v748
    %v765 = vunpack.c.l.bf16 %v749
    %v766 = vld [vmem:[%s1 + $0x7] sm:$0x1]
    %v767 = vlaneseq
    %v768 = vshrl.u32 %v767, 7
    %v769 = vsub.s32 0, %v768
    %v770 = vrot.slane %v766, %v769
    %v771 = vmul.f32 %v750, %v770
    %v772 = vmul.f32 %v751, %v770
    %v773 = vmul.f32 %v752, %v770
    %v774 = vmul.f32 %v753, %v770
    %v775 = vmul.f32 %v754, %v770
    %v776 = vmul.f32 %v755, %v770
    %v777 = vmul.f32 %v756, %v770
    %v778 = vmul.f32 %v757, %v770
    %v779 = vmul.f32 %v758, %v770
    %v780 = vmul.f32 %v759, %v770
    %v781 = vmul.f32 %v760, %v770
    %v782 = vmul.f32 %v761, %v770
    %v783 = vmul.f32 %v762, %v770
    %v784 = vmul.f32 %v763, %v770
    %v785 = vmul.f32 %v764, %v770
    %v786 = vmul.f32 %v765, %v770
    %v787 = vadd.f32 %v717, %v771
    %v788 = vadd.f32 %v718, %v772
    %v789 = vadd.f32 %v719, %v773
    %v790 = vadd.f32 %v720, %v774
    %v791 = vadd.f32 %v721, %v775
    %v792 = vadd.f32 %v722, %v776
    %v793 = vadd.f32 %v723, %v777
    %v794 = vadd.f32 %v724, %v778
    %v795 = vadd.f32 %v725, %v779
    %v796 = vadd.f32 %v726, %v780
    %v797 = vadd.f32 %v727, %v781
    %v798 = vadd.f32 %v728, %v782
    %v799 = vadd.f32 %v729, %v783
    %v800 = vadd.f32 %v730, %v784
    %v801 = vadd.f32 %v731, %v785
    %v802 = vadd.f32 %v732, %v786
    %v803 = vld [vmem:[%s663 + $0x4] sm:$0x1]
    %v804 = vld [vmem:[%s663 + $0xc] sm:$0x1]
    %v805 = vld [vmem:[%s663 + $0x14] sm:$0x1]
    %v806 = vld [vmem:[%s663 + $0x1c] sm:$0x1]
    %v807 = vld [vmem:[%s663 + $0x24] sm:$0x1]
    %v808 = vld [vmem:[%s663 + $0x2c] sm:$0x1]
    %v809 = vld [vmem:[%s663 + $0x34] sm:$0x1]
    %v810 = vld [vmem:[%s663 + $0x3c] sm:$0x1]
    %v811 = vld [vmem:[%s663 + $0x124] sm:$0x1]
    %v812 = vld [vmem:[%s663 + $0x12c] sm:$0x1]
    %v813 = vld [vmem:[%s663 + $0x134] sm:$0x1]
    %v814 = vld [vmem:[%s663 + $0x13c] sm:$0x1]
    %v815 = vld [vmem:[%s663 + $0x144] sm:$0x1]
    %v816 = vld [vmem:[%s663 + $0x14c] sm:$0x1]
    %v817 = vld [vmem:[%s663 + $0x154] sm:$0x1]
    %v818 = vld [vmem:[%s663 + $0x15c] sm:$0x1]
    %v819 = vunpack.c.l.bf16 %v803
    %v820 = vunpack.c.l.bf16 %v804
    %v821 = vunpack.c.l.bf16 %v805
    %v822 = vunpack.c.l.bf16 %v806
    %v823 = vunpack.c.l.bf16 %v807
    %v824 = vunpack.c.l.bf16 %v808
    %v825 = vunpack.c.l.bf16 %v809
    %v826 = vunpack.c.l.bf16 %v810
    %v827 = vunpack.c.l.bf16 %v811
    %v828 = vunpack.c.l.bf16 %v812
    %v829 = vunpack.c.l.bf16 %v813
    %v830 = vunpack.c.l.bf16 %v814
    %v831 = vunpack.c.l.bf16 %v815
    %v832 = vunpack.c.l.bf16 %v816
    %v833 = vunpack.c.l.bf16 %v817
    %v834 = vunpack.c.l.bf16 %v818
    %v835 = vld [vmem:[%s1 + $0x8] sm:$0x1]
    %v836 = vlaneseq
    %v837 = vshrl.u32 %v836, 7
    %v838 = vsub.s32 0, %v837
    %v839 = vrot.slane %v835, %v838
    %v840 = vmul.f32 %v680, %v839
    %v841 = vmul.f32 %v819, %v839
    %v842 = vmul.f32 %v681, %v839
    %v843 = vmul.f32 %v820, %v839
    %v844 = vmul.f32 %v682, %v839
    %v845 = vmul.f32 %v821, %v839
    %v846 = vmul.f32 %v683, %v839
    %v847 = vmul.f32 %v822, %v839
    %v848 = vmul.f32 %v684, %v839
    %v849 = vmul.f32 %v823, %v839
    %v850 = vmul.f32 %v685, %v839
    %v851 = vmul.f32 %v824, %v839
    %v852 = vmul.f32 %v686, %v839
    %v853 = vmul.f32 %v825, %v839
    %v854 = vmul.f32 %v687, %v839
    %v855 = vmul.f32 %v826, %v839
    %v856 = vmul.f32 %v688, %v839
    %v857 = vmul.f32 %v827, %v839
    %v858 = vmul.f32 %v689, %v839
    %v859 = vmul.f32 %v828, %v839
    %v860 = vmul.f32 %v690, %v839
    %v861 = vmul.f32 %v829, %v839
    %v862 = vmul.f32 %v691, %v839
    %v863 = vmul.f32 %v830, %v839
    %v864 = vmul.f32 %v692, %v839
    %v865 = vmul.f32 %v831, %v839
    %v866 = vmul.f32 %v693, %v839
    %v867 = vmul.f32 %v832, %v839
    %v868 = vmul.f32 %v694, %v839
    %v869 = vmul.f32 %v833, %v839
    %v870 = vmul.f32 %v695, %v839
    %v871 = vmul.f32 %v834, %v839
    %v904 = vrot.slane %v840, 1
    %v905 = vrot.slane %v841, 1
    %v906 = vsel %vm261, %v904, %v905
    %v907 = vrot.slane %v842, 1
    %v908 = vrot.slane %v843, 1
    %v909 = vsel %vm261, %v907, %v908
    %v910 = vrot.slane %v844, 1
    %v911 = vrot.slane %v845, 1
    %v912 = vsel %vm261, %v910, %v911
    %v913 = vrot.slane %v846, 1
    %v914 = vrot.slane %v847, 1
    %v915 = vsel %vm261, %v913, %v914
    %v916 = vrot.slane %v848, 1
    %v917 = vrot.slane %v849, 1
    %v918 = vsel %vm261, %v916, %v917
    %v919 = vrot.slane %v850, 1
    %v920 = vrot.slane %v851, 1
    %v921 = vsel %vm261, %v919, %v920
    %v922 = vrot.slane %v852, 1
    %v923 = vrot.slane %v853, 1
    %v924 = vsel %vm261, %v922, %v923
    %v925 = vrot.slane %v854, 1
    %v926 = vrot.slane %v855, 1
    %v927 = vsel %vm261, %v925, %v926
    %v928 = vrot.slane %v856, 1
    %v929 = vrot.slane %v857, 1
    %v930 = vsel %vm261, %v928, %v929
    %v931 = vrot.slane %v858, 1
    %v932 = vrot.slane %v859, 1
    %v933 = vsel %vm261, %v931, %v932
    %v934 = vrot.slane %v860, 1
    %v935 = vrot.slane %v861, 1
    %v936 = vsel %vm261, %v934, %v935
    %v937 = vrot.slane %v862, 1
    %v938 = vrot.slane %v863, 1
    %v939 = vsel %vm261, %v937, %v938
    %v940 = vrot.slane %v864, 1
    %v941 = vrot.slane %v865, 1
    %v942 = vsel %vm261, %v940, %v941
    %v943 = vrot.slane %v866, 1
    %v944 = vrot.slane %v867, 1
    %v945 = vsel %vm261, %v943, %v944
    %v946 = vrot.slane %v868, 1
    %v947 = vrot.slane %v869, 1
    %v948 = vsel %vm261, %v946, %v947
    %v949 = vrot.slane %v870, 1
    %v950 = vrot.slane %v871, 1
    %v951 = vsel %vm261, %v949, %v950
    %v968 = vadd.f32 %v787, %v906
    %v969 = vadd.f32 %v788, %v909
    %v970 = vadd.f32 %v789, %v912
    %v971 = vadd.f32 %v790, %v915
    %v972 = vadd.f32 %v791, %v918
    %v973 = vadd.f32 %v792, %v921
    %v974 = vadd.f32 %v793, %v924
    %v975 = vadd.f32 %v794, %v927
    %v976 = vadd.f32 %v795, %v930
    %v977 = vadd.f32 %v796, %v933
    %v978 = vadd.f32 %v797, %v936
    %v979 = vadd.f32 %v798, %v939
    %v980 = vadd.f32 %v799, %v942
    %v981 = vadd.f32 %v800, %v945
    %v982 = vadd.f32 %v801, %v948
    %v983 = vadd.f32 %v802, %v951
    %v984 = vld [vmem:[%s2] sm:$0x1]
    %v986 = vlaneseq
    %v987 = vshrl.u32 %v986, 7
    %v988 = vsub.s32 0, %v987
    %v989 = vrot.slane %v984, %v988
    %v991 = vadd.f32 %v968, %v989
    %v992 = vadd.f32 %v969, %v989
    %v993 = vadd.f32 %v970, %v989
    %v994 = vadd.f32 %v971, %v989
    %v995 = vadd.f32 %v972, %v989
    %v996 = vadd.f32 %v973, %v989
    %v997 = vadd.f32 %v974, %v989
    %v998 = vadd.f32 %v975, %v989
    %v999 = vadd.f32 %v976, %v989
    %v1000 = vadd.f32 %v977, %v989
    %v1001 = vadd.f32 %v978, %v989
    %v1002 = vadd.f32 %v979, %v989
    %v1003 = vadd.f32 %v980, %v989
    %v1004 = vadd.f32 %v981, %v989
    %v1005 = vadd.f32 %v982, %v989
    %v1006 = vadd.f32 %v983, %v989
    %vm1007 = vcmp.gt.f32.partialorder %v991, 0.0
    %vm1008 = vcmp.gt.f32.partialorder %v992, 0.0
    %vm1009 = vcmp.gt.f32.partialorder %v993, 0.0
    %vm1010 = vcmp.gt.f32.partialorder %v994, 0.0
    %vm1011 = vcmp.gt.f32.partialorder %v995, 0.0
    %vm1012 = vcmp.gt.f32.partialorder %v996, 0.0
    %vm1013 = vcmp.gt.f32.partialorder %v997, 0.0
    %vm1014 = vcmp.gt.f32.partialorder %v998, 0.0
    %vm1015 = vcmp.gt.f32.partialorder %v999, 0.0
    %vm1016 = vcmp.gt.f32.partialorder %v1000, 0.0
    %vm1017 = vcmp.gt.f32.partialorder %v1001, 0.0
    %vm1018 = vcmp.gt.f32.partialorder %v1002, 0.0
    %vm1019 = vcmp.gt.f32.partialorder %v1003, 0.0
    %vm1020 = vcmp.gt.f32.partialorder %v1004, 0.0
    %vm1021 = vcmp.gt.f32.partialorder %v1005, 0.0
    %vm1022 = vcmp.gt.f32.partialorder %v1006, 0.0
    %v1023 = vmul.f32 %v991, 0.2
    %v1024 = vmul.f32 %v992, 0.2
    %v1025 = vmul.f32 %v993, 0.2
    %v1026 = vmul.f32 %v994, 0.2
    %v1027 = vmul.f32 %v995, 0.2
    %v1028 = vmul.f32 %v996, 0.2
    %v1029 = vmul.f32 %v997, 0.2
    %v1030 = vmul.f32 %v998, 0.2
    %v1031 = vmul.f32 %v999, 0.2
    %v1032 = vmul.f32 %v1000, 0.2
    %v1033 = vmul.f32 %v1001, 0.2
    %v1034 = vmul.f32 %v1002, 0.2
    %v1035 = vmul.f32 %v1003, 0.2
    %v1036 = vmul.f32 %v1004, 0.2
    %v1037 = vmul.f32 %v1005, 0.2
    %v1038 = vmul.f32 %v1006, 0.2
    %v1039 = vsel %vm1007, %v991, %v1023
    %v1040 = vsel %vm1008, %v992, %v1024
    %v1041 = vsel %vm1009, %v993, %v1025
    %v1042 = vsel %vm1010, %v994, %v1026
    %v1043 = vsel %vm1011, %v995, %v1027
    %v1044 = vsel %vm1012, %v996, %v1028
    %v1045 = vsel %vm1013, %v997, %v1029
    %v1046 = vsel %vm1014, %v998, %v1030
    %v1047 = vsel %vm1015, %v999, %v1031
    %v1048 = vsel %vm1016, %v1000, %v1032
    %v1049 = vsel %vm1017, %v1001, %v1033
    %v1050 = vsel %vm1018, %v1002, %v1034
    %v1051 = vsel %vm1019, %v1003, %v1035
    %v1052 = vsel %vm1020, %v1004, %v1036
    %v1053 = vsel %vm1021, %v1005, %v1037
    %v1054 = vsel %vm1022, %v1006, %v1038
    %v1055 = vld [vmem:[%s3] sm:$0xff]
    %v1056 = vld [vmem:[%s4] sm:$0x1]
    %v1058 = vlaneseq
    %v1059 = vshrl.u32 %v1058, 7
    %v1060 = vsub.s32 0, %v1059
    %v1061 = vrot.slane %v1056, %v1060
    %vm1063 = vcmask 64512
    %v1065 = vsel %vm1063, %v1039, 0
    %v1068 = vsel %vm1063, %v1040, 0
    %v1071 = vsel %vm1063, %v1041, 0
    %v1074 = vsel %vm1063, %v1042, 0
    %v1077 = vsel %vm1063, %v1043, 0
    %v1080 = vsel %vm1063, %v1044, 0
    %v1083 = vsel %vm1063, %v1045, 0
    %v1086 = vsel %vm1063, %v1046, 0
    %v1089 = vsel %vm1063, %v1047, 0
    %v1092 = vsel %vm1063, %v1048, 0
    %v1095 = vsel %vm1063, %v1049, 0
    %v1098 = vsel %vm1063, %v1050, 0
    %v1101 = vsel %vm1063, %v1051, 0
    %v1104 = vsel %vm1063, %v1052, 0
    %v1107 = vsel %vm1063, %v1053, 0
    %v1110 = vsel %vm1063, %v1054, 0
    %1112 = vmatprep.subr.mxu0 0.0
    %1113 = vmatpush1.msra.mxu0 0.0
    %1114 = vmatprep.subr.mxu0 0.0
    %1115 = vmatpush1.msra.mxu0 0.0
    %1116 = vmatprep.subr.mxu0 0.0
    %1117 = vmatpush1.msra.mxu0 0.0
    %1118 = vmatprep.subr.mxu0 0.0
    %1119 = vmatpush1.msra.mxu0 0.0
    %1120 = vmatprep.subr.mxu0 0.0
    %1121 = vmatpush1.msra.mxu0 0.0
    %1122 = vmatprep.subr.mxu0 0.0
    %1123 = vmatpush1.msra.mxu0 0.0
    %1124 = vmatprep.subr.mxu0 0.0
    %1125 = vmatpush1.msra.mxu0 0.0
    %1126 = vmatprep.subr.mxu0 0.0
    %1127 = vmatpush1.msra.mxu0 0.0
    %1128 = vmatprep.subr.mxu0 0.0
    %1129 = vmatpush1.msra.mxu0 0.0
    %1130 = vmatprep.subr.mxu0 0.0
    %1131 = vmatpush1.msra.mxu0 0.0
    %1132 = vmatprep.subr.mxu0 0.0
    %1133 = vmatpush1.msra.mxu0 0.0
    %1134 = vmatprep.subr.mxu0 0.0
    %1135 = vmatpush1.msra.mxu0 0.0
    %1136 = vmatprep.subr.mxu0 0.0
    %1137 = vmatpush1.msra.mxu0 0.0
    %1138 = vmatprep.subr.mxu0 0.0
    %1139 = vmatpush1.msra.mxu0 0.0
    %1140 = vmatprep.subr.mxu0 0.0
    %1141 = vmatpush1.msra.mxu0 0.0
    %1142 = vmatprep.subr.mxu0 0.0
    %1143 = vmatpush1.msra.mxu0 %v1055
    %1144 = vmatprep.subr.mxu0 0.0
    %1145 = vmatpush2.msra.mxu0 0.0
    %1146 = vmatprep.subr.mxu0 0.0
    %1147 = vmatpush2.msra.mxu0 0.0
    %1148 = vmatprep.subr.mxu0 0.0
    %1149 = vmatpush2.msra.mxu0 0.0
    %1150 = vmatprep.subr.mxu0 0.0
    %1151 = vmatpush2.msra.mxu0 0.0
    %1152 = vmatprep.subr.mxu0 0.0
    %1153 = vmatpush2.msra.mxu0 0.0
    %1154 = vmatprep.subr.mxu0 0.0
    %1155 = vmatpush2.msra.mxu0 0.0
    %1156 = vmatprep.subr.mxu0 0.0
    %1157 = vmatpush2.msra.mxu0 0.0
    %1158 = vmatprep.subr.mxu0 0.0
    %1159 = vmatpush2.msra.mxu0 0.0
    %1160 = vmatprep.subr.mxu0 0.0
    %1161 = vmatpush2.msra.mxu0 0.0
    %1162 = vmatprep.subr.mxu0 0.0
    %1163 = vmatpush2.msra.mxu0 0.0
    %1164 = vmatprep.subr.mxu0 0.0
    %1165 = vmatpush2.msra.mxu0 0.0
    %1166 = vmatprep.subr.mxu0 0.0
    %1167 = vmatpush2.msra.mxu0 0.0
    %1168 = vmatprep.subr.mxu0 0.0
    %1169 = vmatpush2.msra.mxu0 0.0
    %1170 = vmatprep.subr.mxu0 0.0
    %1171 = vmatpush2.msra.mxu0 0.0
    %1172 = vmatprep.subr.mxu0 0.0
    %1173 = vmatpush2.msra.mxu0 0.0
    %1174 = vmatprep.subr.mxu0 0.0
    %1175 = vmatpush2.msra.mxu0 0.0
    %1176 = vmatprep.mubr.f32.mxu0 0.0
    %1177 = vmatmul.mubr.f32.gmra.mxu0 %v1065
    %v1178 = vpop.f32.mrf.mxu0
    %v1179 = vadd.f32 %v1061, %v1178
    %v1180 = vpop.f32.mrf.mxu0
    %1181 = vmatprep.mubr.f32.mxu0 0.0
    %1182 = vmatmul.mubr.f32.gmra.mxu0 %v1068
    %v1183 = vpop.f32.mrf.mxu0
    %v1184 = vadd.f32 %v1061, %v1183
    %v1185 = vpop.f32.mrf.mxu0
    %1186 = vmatprep.mubr.f32.mxu0 0.0
    %1187 = vmatmul.mubr.f32.gmra.mxu0 %v1071
    %v1188 = vpop.f32.mrf.mxu0
    %v1189 = vadd.f32 %v1061, %v1188
    %v1190 = vpop.f32.mrf.mxu0
    %1191 = vmatprep.mubr.f32.mxu0 0.0
    %1192 = vmatmul.mubr.f32.gmra.mxu0 %v1074
    %v1193 = vpop.f32.mrf.mxu0
    %v1194 = vadd.f32 %v1061, %v1193
    %v1195 = vpop.f32.mrf.mxu0
    %1196 = vmatprep.mubr.f32.mxu0 0.0
    %1197 = vmatmul.mubr.f32.gmra.mxu0 %v1077
    %v1198 = vpop.f32.mrf.mxu0
    %v1199 = vadd.f32 %v1061, %v1198
    %v1200 = vpop.f32.mrf.mxu0
    %1201 = vmatprep.mubr.f32.mxu0 0.0
    %1202 = vmatmul.mubr.f32.gmra.mxu0 %v1080
    %v1203 = vpop.f32.mrf.mxu0
    %v1204 = vadd.f32 %v1061, %v1203
    %v1205 = vpop.f32.mrf.mxu0
    %1206 = vmatprep.mubr.f32.mxu0 0.0
    %1207 = vmatmul.mubr.f32.gmra.mxu0 %v1083
    %v1208 = vpop.f32.mrf.mxu0
    %v1209 = vadd.f32 %v1061, %v1208
    %v1210 = vpop.f32.mrf.mxu0
    %1211 = vmatprep.mubr.f32.mxu0 0.0
    %1212 = vmatmul.mubr.f32.gmra.mxu0 %v1086
    %v1213 = vpop.f32.mrf.mxu0
    %v1214 = vadd.f32 %v1061, %v1213
    %v1215 = vpop.f32.mrf.mxu0
    %1216 = vmatprep.mubr.f32.mxu0 0.0
    %1217 = vmatmul.mubr.f32.gmra.mxu0 %v1089
    %v1218 = vpop.f32.mrf.mxu0
    %v1219 = vadd.f32 %v1061, %v1218
    %v1220 = vpop.f32.mrf.mxu0
    %1221 = vmatprep.mubr.f32.mxu0 0.0
    %1222 = vmatmul.mubr.f32.gmra.mxu0 %v1092
    %v1223 = vpop.f32.mrf.mxu0
    %v1224 = vadd.f32 %v1061, %v1223
    %v1225 = vpop.f32.mrf.mxu0
    %1226 = vmatprep.mubr.f32.mxu0 0.0
    %1227 = vmatmul.mubr.f32.gmra.mxu0 %v1095
    %v1228 = vpop.f32.mrf.mxu0
    %v1229 = vadd.f32 %v1061, %v1228
    %v1230 = vpop.f32.mrf.mxu0
    %1231 = vmatprep.mubr.f32.mxu0 0.0
    %1232 = vmatmul.mubr.f32.gmra.mxu0 %v1098
    %v1233 = vpop.f32.mrf.mxu0
    %v1234 = vadd.f32 %v1061, %v1233
    %v1235 = vpop.f32.mrf.mxu0
    %1236 = vmatprep.mubr.f32.mxu0 0.0
    %1237 = vmatmul.mubr.f32.gmra.mxu0 %v1101
    %v1238 = vpop.f32.mrf.mxu0
    %v1239 = vadd.f32 %v1061, %v1238
    %v1240 = vpop.f32.mrf.mxu0
    %1241 = vmatprep.mubr.f32.mxu0 0.0
    %1242 = vmatmul.mubr.f32.gmra.mxu0 %v1104
    %v1243 = vpop.f32.mrf.mxu0
    %v1244 = vadd.f32 %v1061, %v1243
    %v1245 = vpop.f32.mrf.mxu0
    %1246 = vmatprep.mubr.f32.mxu0 0.0
    %1247 = vmatmul.mubr.f32.gmra.mxu0 %v1107
    %v1248 = vpop.f32.mrf.mxu0
    %v1249 = vadd.f32 %v1061, %v1248
    %v1250 = vpop.f32.mrf.mxu0
    %1251 = vmatprep.mubr.f32.mxu0 0.0
    %1252 = vmatmul.mubr.f32.gmra.mxu0 %v1110
    %v1253 = vpop.f32.mrf.mxu0
    %v1254 = vadd.f32 %v1061, %v1253
    %v1255 = vpop.f32.mrf.mxu0
    %1256 = vdwg.mxu0
    %vm1257 = vcmp.gt.f32.partialorder %v1179, 0.0
    %vm1258 = vcmp.gt.f32.partialorder %v1184, 0.0
    %vm1259 = vcmp.gt.f32.partialorder %v1189, 0.0
    %vm1260 = vcmp.gt.f32.partialorder %v1194, 0.0
    %vm1261 = vcmp.gt.f32.partialorder %v1199, 0.0
    %vm1262 = vcmp.gt.f32.partialorder %v1204, 0.0
    %vm1263 = vcmp.gt.f32.partialorder %v1209, 0.0
    %vm1264 = vcmp.gt.f32.partialorder %v1214, 0.0
    %vm1265 = vcmp.gt.f32.partialorder %v1219, 0.0
    %vm1266 = vcmp.gt.f32.partialorder %v1224, 0.0
    %vm1267 = vcmp.gt.f32.partialorder %v1229, 0.0
    %vm1268 = vcmp.gt.f32.partialorder %v1234, 0.0
    %vm1269 = vcmp.gt.f32.partialorder %v1239, 0.0
    %vm1270 = vcmp.gt.f32.partialorder %v1244, 0.0
    %vm1271 = vcmp.gt.f32.partialorder %v1249, 0.0
    %vm1272 = vcmp.gt.f32.partialorder %v1254, 0.0
    %v1273 = vmul.f32 %v1179, 0.2
    %v1274 = vmul.f32 %v1184, 0.2
    %v1275 = vmul.f32 %v1189, 0.2
    %v1276 = vmul.f32 %v1194, 0.2
    %v1277 = vmul.f32 %v1199, 0.2
    %v1278 = vmul.f32 %v1204, 0.2
    %v1279 = vmul.f32 %v1209, 0.2
    %v1280 = vmul.f32 %v1214, 0.2
    %v1281 = vmul.f32 %v1219, 0.2
    %v1282 = vmul.f32 %v1224, 0.2
    %v1283 = vmul.f32 %v1229, 0.2
    %v1284 = vmul.f32 %v1234, 0.2
    %v1285 = vmul.f32 %v1239, 0.2
    %v1286 = vmul.f32 %v1244, 0.2
    %v1287 = vmul.f32 %v1249, 0.2
    %v1288 = vmul.f32 %v1254, 0.2
    %v1289 = vsel %vm1257, %v1179, %v1273
    %v1290 = vsel %vm1258, %v1184, %v1274
    %v1291 = vsel %vm1259, %v1189, %v1275
    %v1292 = vsel %vm1260, %v1194, %v1276
    %v1293 = vsel %vm1261, %v1199, %v1277
    %v1294 = vsel %vm1262, %v1204, %v1278
    %v1295 = vsel %vm1263, %v1209, %v1279
    %v1296 = vsel %vm1264, %v1214, %v1280
    %v1297 = vsel %vm1265, %v1219, %v1281
    %v1298 = vsel %vm1266, %v1224, %v1282
    %v1299 = vsel %vm1267, %v1229, %v1283
    %v1300 = vsel %vm1268, %v1234, %v1284
    %v1301 = vsel %vm1269, %v1239, %v1285
    %v1302 = vsel %vm1270, %v1244, %v1286
    %v1303 = vsel %vm1271, %v1249, %v1287
    %v1304 = vsel %vm1272, %v1254, %v1288
    %vm1305 = vcmask 130048
    %1306 = vst.msk [vmem:[#allocation2] sm:$0xff] %vm1305, %v1289
    %1307 = vst.msk [vmem:[#allocation2 + $0x8] sm:$0xff] %vm1305, %v1290
    %1308 = vst.msk [vmem:[#allocation2 + $0x10] sm:$0xff] %vm1305, %v1291
    %1309 = vst.msk [vmem:[#allocation2 + $0x18] sm:$0xff] %vm1305, %v1292
    %1310 = vst.msk [vmem:[#allocation2 + $0x20] sm:$0xff] %vm1305, %v1293
    %1311 = vst.msk [vmem:[#allocation2 + $0x28] sm:$0xff] %vm1305, %v1294
    %1312 = vst.msk [vmem:[#allocation2 + $0x30] sm:$0xff] %vm1305, %v1295
    %1313 = vst.msk [vmem:[#allocation2 + $0x38] sm:$0xff] %vm1305, %v1296
    %1314 = vst.msk [vmem:[#allocation2 + $0x40] sm:$0xff] %vm1305, %v1297
    %1315 = vst.msk [vmem:[#allocation2 + $0x48] sm:$0xff] %vm1305, %v1298
    %1316 = vst.msk [vmem:[#allocation2 + $0x50] sm:$0xff] %vm1305, %v1299
    %1317 = vst.msk [vmem:[#allocation2 + $0x58] sm:$0xff] %vm1305, %v1300
    %1318 = vst.msk [vmem:[#allocation2 + $0x60] sm:$0xff] %vm1305, %v1301
    %1319 = vst.msk [vmem:[#allocation2 + $0x68] sm:$0xff] %vm1305, %v1302
    %1320 = vst.msk [vmem:[#allocation2 + $0x70] sm:$0xff] %vm1305, %v1303
    %1321 = vst.msk [vmem:[#allocation2 + $0x78] sm:$0xff] %vm1305, %v1304
    // Predicated region
    $region22: #{dsconv_forward.1} parent=1 // pred_check
      _
    $region23: #{dsconv_forward.1} parent=1 // pred_check_branch
      %1323 = sbr.rel (0) target = $region25
    $region24: #{dsconv_forward.1} parent=1 // pred_region
      %s1325 = ssub.s32 2048, 2048
      %1326 = vsyncadd [#allocation3], %s1325
      %s1327 = sshll.u32 [#allocation2], 4
      %s1328 = int_to_ptr.vmem [resolvable:$true] %s1327
      %1333 = dma.vmem_to_hbm [thread:$0]  %s1328, 2048, %s5, [#allocation3], 128, 128, 8
    $region25: #{dsconv_forward.1} parent=1 // pred_fallthru
      _
    // Predicated region
    $region26: #{dsconv_forward.1} parent=1 // pred_check
      _
    $region27: #{dsconv_forward.1} parent=1 // pred_check_branch
      %1335 = sbr.rel (0) target = $region29
    $region28: #{dsconv_forward.1} parent=1 // pred_region
      %1336 = dma.done [#allocation3], 2048
    $region29: #{dsconv_forward.1} parent=1 // pred_fallthru
      _
    %1337 = vsyncpa [#allocation3], 1

</llo_original>
